<compile_context>
chip_gen: v7x
topology: tpu7x:2x2x1
jax: 0.10.0
libtpu: 0.0.40
codegen_flags: <defaults>
</compile_context>

<pallas_src>
import jax
import jax.numpy as jnp
from jax.experimental import pallas as pl
from jax.experimental.pallas import tpu as pltpu

LANE = 128   # lane width (last-dim granularity)


def _round_up(n, m):
    return ((n + m - 1) // m) * m


def mlp_kernel(x_ref, w1_ref, b1_ref, w2_ref, b2_ref, w3_ref, b3_ref,
               y_ref, h2_ref):
    # x tile: (m_tile, 784) fp32 straight from HBM; cast to bf16 in-register
    # (VPU cast is free in this mem-bound regime).
    x = x_ref[...].astype(jnp.bfloat16)

    # h_1 = relu(x @ W1 + b1)  -- bf16 MXU matmul, fp32 accumulate/epilogue.
    h1 = jnp.dot(x, w1_ref[...], preferred_element_type=jnp.float32)
    h1 = jnp.maximum(h1 + b1_ref[...], 0.0)

    # h_2 = relu(h1 @ W2 + b2)
    h2 = jnp.dot(h1.astype(jnp.bfloat16), w2_ref[...],
                 preferred_element_type=jnp.float32)
    h2 = jnp.maximum(h2 + b2_ref[...], 0.0)

    # y_pred = h2 @ W3 + b3
    y = jnp.dot(h2.astype(jnp.bfloat16), w3_ref[...],
                preferred_element_type=jnp.float32)
    y = y + b3_ref[...]

    # bf16 writeback halves output HBM bytes.
    h2_ref[...] = h2.astype(h2_ref.dtype)
    y_ref[...] = y.astype(y_ref.dtype)


def prepare_params(params):
    """Pad weight/bias *output* dims to 128-multiples; weights bf16, biases fp32.

    The contraction dim K (=input_dim) is NOT padded: the x block uses the
    full-dim exemption and Mosaic masks the partial lane tile internally.
    """
    w1, b1, w2, b2, w3, b3 = params
    in_dim, h1 = w1.shape
    h2 = w2.shape[1]
    out_dim = w3.shape[1]

    N1 = _round_up(h1, LANE)
    N2 = _round_up(h2, LANE)
    N3 = _round_up(out_dim, LANE)

    def pad2(a, rows, cols, dtype):
        buf = jnp.zeros((rows, cols), dtype)
        return buf.at[:a.shape[0], :a.shape[1]].set(a.astype(dtype))

    padded = (
        pad2(w1, in_dim, N1, jnp.bfloat16), pad2(b1, 1, N1, jnp.float32),
        pad2(w2, N1, N2, jnp.bfloat16),     pad2(b2, 1, N2, jnp.float32),
        pad2(w3, N2, N3, jnp.bfloat16),     pad2(b3, 1, N3, jnp.float32),
    )
    dims = dict(in_dim=in_dim, hidden1=h1, hidden2=h2, out_dim=out_dim,
                K=in_dim, N1=N1, N2=N2, N3=N3)
    return padded, dims


def _choose_m_tile(batch):
    if batch <= 256:
        # Full-batch block: always layout-legal (block dim == array dim),
        # single grid step -> lowest latency for small-batch inference.
        return batch
    # Large batch: up to 512-row tiles (amortize per-step pipeline overhead),
    # capped so grid_m >= 2 and a "parallel" batch axis can feed both v7x TCs.
    return min(512, _round_up(pl.cdiv(batch, 2), 128))


def mlp_forward(x_nchw, prepared, slice_outputs=True):
    """Forward pass. Returns (y_pred, h_2) like the PyTorch module.

    Outputs are bfloat16 (fp32 math inside the kernel).  With
    slice_outputs=False the lane-dense padded buffers (batch, 128) are
    returned directly, skipping an extra HBM copy pass.
    """
    (w1p, b1p, w2p, b2p, w3p, b3p), d = prepared
    batch = x_nchw.shape[0]
    x = x_nchw.reshape(batch, -1)          # x.view(batch_size, -1); free reshape
    assert x.shape[1] == d["K"]
    x = x.astype(jnp.float32)              # no-op for fp32 inputs

    K, N1, N2, N3 = d["K"], d["N1"], d["N2"], d["N3"]
    m_tile = _choose_m_tile(batch)
    grid_m = pl.cdiv(batch, m_tile)        # partial tail tiles are masked

    act_map = lambda i: (i, 0)    # activation tiles stream over the grid
    const_map = lambda i: (0, 0)  # weights/biases resident (fetched once)

    y_out, h2_out = pl.pallas_call(
        mlp_kernel,
        out_shape=(
            jax.ShapeDtypeStruct((batch, N3), jnp.bfloat16),
            jax.ShapeDtypeStruct((batch, N2), jnp.bfloat16),
        ),
        grid=(grid_m,),
        in_specs=[
            pl.BlockSpec((m_tile, K), act_map),     # x (full-K block, fp32)
            pl.BlockSpec((K, N1), const_map),       # W1
            pl.BlockSpec((1, N1), const_map),       # b1
            pl.BlockSpec((N1, N2), const_map),      # W2
            pl.BlockSpec((1, N2), const_map),       # b2
            pl.BlockSpec((N2, N3), const_map),      # W3
            pl.BlockSpec((1, N3), const_map),       # b3
        ],
        out_specs=(
            pl.BlockSpec((m_tile, N3), act_map),
            pl.BlockSpec((m_tile, N2), act_map),
        ),
        compiler_params=pltpu.CompilerParams(
            dimension_semantics=("parallel",),
        ),
    )(x, w1p, b1p, w2p, b2p, w3p, b3p)

    if slice_outputs:
        return y_out[:, :d["out_dim"]], h2_out[:, :d["hidden2"]]
    return y_out, h2_out


def init_params(key, input_dim, output_dim):
    """Deterministic init matching nn.Linear shapes (stored transposed)."""
    h1, h2 = 250, 100
    keys = jax.random.split(key, 6)

    def linear(kw, kb, fan_in, fan_out):
        bound = 1.0 / jnp.sqrt(jnp.float32(fan_in))
        # PyTorch weight is (out, in); we store its transpose (in, out).
        w = jax.random.uniform(kw, (fan_in, fan_out), jnp.float32, -bound, bound)
        b = jax.random.uniform(kb, (1, fan_out), jnp.float32, -bound, bound)
        return w, b

    w1, b1 = linear(keys[0], keys[1], input_dim, h1)
    w2, b2 = linear(keys[2], keys[3], h1, h2)
    w3, b3 = linear(keys[4], keys[5], h2, output_dim)
    return (w1, b1, w2, b2, w3, b3)


def _reference(x_flat, params):
    """Plain-JAX reference with matching bf16-matmul / fp32-accumulate math."""
    w1, b1, w2, b2, w3, b3 = params
    bf = lambda a: a.astype(jnp.bfloat16)
    r1 = jnp.maximum(
        jnp.dot(bf(x_flat), bf(w1), preferred_element_type=jnp.float32) + b1, 0.0)
    r2 = jnp.maximum(
        jnp.dot(bf(r1), bf(w2), preferred_element_type=jnp.float32) + b2, 0.0)
    ry = jnp.dot(bf(r2), bf(w3), preferred_element_type=jnp.float32) + b3
    return ry, r2


if __name__ == "__main__":
    key = jax.random.PRNGKey(0)
    k_x, k_p, k_x2 = jax.random.split(key, 3)

    # MNIST-like input: 1x28x28 images -> input_dim = 784, 10 classes.
    C, H, W = 1, 28, 28
    input_dim = C * H * W
    output_dim = 10

    params = init_params(k_p, input_dim, output_dim)
    prepared = prepare_params(params)

    def check(x_img):
        batch = x_img.shape[0]
        y_pred, h_2 = mlp_forward(x_img, prepared)
        jax.block_until_ready((y_pred, h_2))
        ry, r2 = _reference(x_img.reshape(batch, -1), params)
        assert y_pred.shape == (batch, output_dim)
        assert h_2.shape == (batch, 100)
        assert jnp.allclose(y_pred.astype(jnp.float32), ry, atol=2e-2, rtol=2e-2)
        assert jnp.allclose(h_2.astype(jnp.float32), r2, atol=2e-2, rtol=2e-2)

    # Small-batch / latency path: single full-batch block, grid_m = 1.
    x_small = jax.random.normal(k_x, (2, C, H, W), jnp.float32)
    check(x_small)

    # Large-batch / throughput path: 256-row tiles, grid_m = 2 (both v7x TCs fed).
    x_big = jax.random.normal(k_x2, (512, C, H, W), jnp.float32)
    check(x_big)

    print("KERNEL_OK")
</pallas_src>

<mosaic_0001>
module attributes {stable_mosaic.version = 11 : i64} {
  func.func @mlp_kernel(%arg0: i32, %arg1: memref<2x784xf32, #tpu.memory_space<vmem>>, %arg2: memref<784x256xbf16, #tpu.memory_space<vmem>>, %arg3: memref<1x256xf32, #tpu.memory_space<vmem>>, %arg4: memref<256x128xbf16, #tpu.memory_space<vmem>>, %arg5: memref<1x128xf32, #tpu.memory_space<vmem>>, %arg6: memref<128x128xbf16, #tpu.memory_space<vmem>>, %arg7: memref<1x128xf32, #tpu.memory_space<vmem>>, %arg8: memref<2x128xbf16, #tpu.memory_space<vmem>>, %arg9: memref<2x128xbf16, #tpu.memory_space<vmem>>) attributes {dimension_semantics = [#tpu.dimension_semantics<parallel>], iteration_bounds = array<i64: 1>, scalar_prefetch = 0 : i64, scratch_operands = 0 : i64, tpu.core_type = #tpu.core_type<tc>, window_params = [{transform_indices = @transform_0, window_bounds = array<i64: 2, 784>}, {pipeline_mode = #tpu.pipeline_mode<synchronous>, transform_indices = @transform_1, window_bounds = array<i64: 784, 256>}, {pipeline_mode = #tpu.pipeline_mode<synchronous>, transform_indices = @transform_2, window_bounds = array<i64: 1, 256>}, {pipeline_mode = #tpu.pipeline_mode<synchronous>, transform_indices = @transform_3, window_bounds = array<i64: 256, 128>}, {pipeline_mode = #tpu.pipeline_mode<synchronous>, transform_indices = @transform_4, window_bounds = array<i64: 1, 128>}, {pipeline_mode = #tpu.pipeline_mode<synchronous>, transform_indices = @transform_5, window_bounds = array<i64: 128, 128>}, {pipeline_mode = #tpu.pipeline_mode<synchronous>, transform_indices = @transform_6, window_bounds = array<i64: 1, 128>}, {transform_indices = @transform_7, window_bounds = array<i64: 2, 128>}, {transform_indices = @transform_8, window_bounds = array<i64: 2, 128>}]} {
    %c0 = arith.constant 0 : index
    %c0_0 = arith.constant 0 : index
    %0 = vector.load %arg1[%c0, %c0_0] : memref<2x784xf32, #tpu.memory_space<vmem>>, vector<2x784xf32>
    %1 = arith.truncf %0 : vector<2x784xf32> to vector<2x784xbf16>
    %c0_1 = arith.constant 0 : index
    %c0_2 = arith.constant 0 : index
    %2 = vector.load %arg2[%c0_1, %c0_2] : memref<784x256xbf16, #tpu.memory_space<vmem>>, vector<784x256xbf16>
    %cst = arith.constant dense<0.000000e+00> : vector<2x256xf32>
    %3 = tpu.matmul %1, %2, %cst {dimension_numbers = #tpu.dot_dimension_numbers<[1], [0], [0], [1], [0, 0, 1, 1], [], []>} : vector<2x784xbf16>, vector<784x256xbf16>, vector<2x256xf32> -> vector<2x256xf32>
    %c0_3 = arith.constant 0 : index
    %c0_4 = arith.constant 0 : index
    %4 = vector.load %arg3[%c0_3, %c0_4] : memref<1x256xf32, #tpu.memory_space<vmem>>, vector<1x256xf32>
    %5 = vector.broadcast %4 : vector<1x256xf32> to vector<2x256xf32>
    %6 = arith.addf %3, %5 : vector<2x256xf32>
    %cst_5 = arith.constant 0.000000e+00 : f32
    %7 = vector.broadcast %cst_5 : f32 to vector<2x256xf32>
    %8 = arith.maximumf %6, %7 : vector<2x256xf32>
    %9 = arith.truncf %8 : vector<2x256xf32> to vector<2x256xbf16>
    %c0_6 = arith.constant 0 : index
    %c0_7 = arith.constant 0 : index
    %10 = vector.load %arg4[%c0_6, %c0_7] : memref<256x128xbf16, #tpu.memory_space<vmem>>, vector<256x128xbf16>
    %cst_8 = arith.constant dense<0.000000e+00> : vector<2x128xf32>
    %11 = tpu.matmul %9, %10, %cst_8 {dimension_numbers = #tpu.dot_dimension_numbers<[1], [0], [0], [1], [0, 0, 1, 1], [], []>} : vector<2x256xbf16>, vector<256x128xbf16>, vector<2x128xf32> -> vector<2x128xf32>
    %c0_9 = arith.constant 0 : index
    %c0_10 = arith.constant 0 : index
    %12 = vector.load %arg5[%c0_9, %c0_10] : memref<1x128xf32, #tpu.memory_space<vmem>>, vector<1x128xf32>
    %13 = vector.broadcast %12 : vector<1x128xf32> to vector<2x128xf32>
    %14 = arith.addf %11, %13 : vector<2x128xf32>
    %cst_11 = arith.constant 0.000000e+00 : f32
    %15 = vector.broadcast %cst_11 : f32 to vector<2x128xf32>
    %16 = arith.maximumf %14, %15 : vector<2x128xf32>
    %17 = arith.truncf %16 : vector<2x128xf32> to vector<2x128xbf16>
    %c0_12 = arith.constant 0 : index
    %c0_13 = arith.constant 0 : index
    %18 = vector.load %arg6[%c0_12, %c0_13] : memref<128x128xbf16, #tpu.memory_space<vmem>>, vector<128x128xbf16>
    %cst_14 = arith.constant dense<0.000000e+00> : vector<2x128xf32>
    %19 = tpu.matmul %17, %18, %cst_14 {dimension_numbers = #tpu.dot_dimension_numbers<[1], [0], [0], [1], [0, 0, 1, 1], [], []>} : vector<2x128xbf16>, vector<128x128xbf16>, vector<2x128xf32> -> vector<2x128xf32>
    %c0_15 = arith.constant 0 : index
    %c0_16 = arith.constant 0 : index
    %20 = vector.load %arg7[%c0_15, %c0_16] : memref<1x128xf32, #tpu.memory_space<vmem>>, vector<1x128xf32>
    %21 = vector.broadcast %20 : vector<1x128xf32> to vector<2x128xf32>
    %22 = arith.addf %19, %21 : vector<2x128xf32>
    %23 = arith.truncf %16 : vector<2x128xf32> to vector<2x128xbf16>
    %c0_17 = arith.constant 0 : index
    %c0_18 = arith.constant 0 : index
    %24 = vector.load %arg9[%c0_17, %c0_18] : memref<2x128xbf16, #tpu.memory_space<vmem>>, vector<2x128xbf16>
    tpu.vector_store %arg9[%c0_17, %c0_18], %23 {strides = array<i32>} : memref<2x128xbf16, #tpu.memory_space<vmem>>, vector<2x128xbf16>,
    %25 = arith.truncf %22 : vector<2x128xf32> to vector<2x128xbf16>
    %c0_19 = arith.constant 0 : index
    %c0_20 = arith.constant 0 : index
    %26 = vector.load %arg8[%c0_19, %c0_20] : memref<2x128xbf16, #tpu.memory_space<vmem>>, vector<2x128xbf16>
    tpu.vector_store %arg8[%c0_19, %c0_20], %25 {strides = array<i32>} : memref<2x128xbf16, #tpu.memory_space<vmem>>, vector<2x128xbf16>,
    return
  }
  func.func @transform_0(%arg0: i32) -> (i32, i32) {
    %c0_i32 = arith.constant 0 : i32
    %c0_i32_0 = arith.constant 0 : i32
    return %arg0, %c0_i32 : i32, i32
  }
  func.func @transform_1(%arg0: i32) -> (i32, i32) {
    %c0_i32 = arith.constant 0 : i32
    %c0_i32_0 = arith.constant 0 : i32
    %c0_i32_1 = arith.constant 0 : i32
    return %c0_i32, %c0_i32_0 : i32, i32
  }
  func.func @transform_2(%arg0: i32) -> (i32, i32) {
    %c0_i32 = arith.constant 0 : i32
    %c0_i32_0 = arith.constant 0 : i32
    %c0_i32_1 = arith.constant 0 : i32
    return %c0_i32, %c0_i32_0 : i32, i32
  }
  func.func @transform_3(%arg0: i32) -> (i32, i32) {
    %c0_i32 = arith.constant 0 : i32
    %c0_i32_0 = arith.constant 0 : i32
    %c0_i32_1 = arith.constant 0 : i32
    return %c0_i32, %c0_i32_0 : i32, i32
  }
  func.func @transform_4(%arg0: i32) -> (i32, i32) {
    %c0_i32 = arith.constant 0 : i32
    %c0_i32_0 = arith.constant 0 : i32
    %c0_i32_1 = arith.constant 0 : i32
    return %c0_i32, %c0_i32_0 : i32, i32
  }
  func.func @transform_5(%arg0: i32) -> (i32, i32) {
    %c0_i32 = arith.constant 0 : i32
    %c0_i32_0 = arith.constant 0 : i32
    %c0_i32_1 = arith.constant 0 : i32
    return %c0_i32, %c0_i32_0 : i32, i32
  }
  func.func @transform_6(%arg0: i32) -> (i32, i32) {
    %c0_i32 = arith.constant 0 : i32
    %c0_i32_0 = arith.constant 0 : i32
    %c0_i32_1 = arith.constant 0 : i32
    return %c0_i32, %c0_i32_0 : i32, i32
  }
  func.func @transform_7(%arg0: i32) -> (i32, i32) {
    %c0_i32 = arith.constant 0 : i32
    %c0_i32_0 = arith.constant 0 : i32
    return %arg0, %c0_i32 : i32, i32
  }
  func.func @transform_8(%arg0: i32) -> (i32, i32) {
    %c0_i32 = arith.constant 0 : i32
    %c0_i32_0 = arith.constant 0 : i32
    return %arg0, %c0_i32 : i32, i32
  }
}

</mosaic_0001>

<llo_original>
// kernel: tpu_custom_call.1
$region0: #{tpu_custom_call.1}
  #allocation0 [shape = 'u32[]', space=smem, size = 0x4, offset = 0x4, fixed_abs, tag = 'smem constant byte address 0x4 - core index']
  #allocation1 [shape = 'u32[144,128]{1,0:T(1,128)}', space=vmem, size = 0x12000, scoped, tag = 'internal scratch']
  %s0 = inlined_call_operand.hbm [shape: f32[2,784], index: 0, kind: input, shape index: {}]
  %s1 = inlined_call_operand.hbm [shape: bf16[784,256], index: 1, kind: input, shape index: {}]
  %s2 = inlined_call_operand.vmem [shape: f32[1,256], index: 2, kind: input, shape index: {}]
  %s3 = inlined_call_operand.hbm [shape: bf16[256,128], index: 3, kind: input, shape index: {}]
  %s4 = inlined_call_operand.vmem [shape: f32[1,128], index: 4, kind: input, shape index: {}]
  %s5 = inlined_call_operand.hbm [shape: bf16[128,128], index: 5, kind: input, shape index: {}]
  %s6 = inlined_call_operand.vmem [shape: f32[1,128], index: 6, kind: input, shape index: {}]
  %s7 = inlined_call_operand.hbm [shape: bf16[2,128], index: 7, kind: output, shape index: {0}]
  %s8 = inlined_call_operand.hbm [shape: bf16[2,128], index: 8, kind: output, shape index: {1}]
  %9 = xla_tuple %s7, %s8
  %s10 = sld [smem:[#allocation0]]
  $region62: #{tpu_custom_call.1} parent=0
    _
  %s12 = ssub.s32 1, %s10
  %s13 = scalar_select 0, %s12, %s10
  $region1: #{tpu_custom_call.1} parent=0
    #allocation2 [shape = 'u8[7168]{0}', space=vmem, size = 0x1c00, scoped, tag = 'input window, operand 0, single buffered']
    #allocation3 [shape = 's32[1]{0}', space=sflag, size = 0x4, scoped, tag = 'scoped memory for tpu_custom_call.1']
    #allocation4 [shape = 's32[1]{0}', space=sflag, size = 0x4, scoped, tag = 'scoped memory for tpu_custom_call.1']
    #allocation5 [shape = 'u8[401408]{0}', space=vmem, size = 0x62000, scoped, tag = 'input window, operand 1, single buffered']
    #allocation6 [shape = 's32[1]{0}', space=sflag, size = 0x4, scoped, tag = 'scoped memory for tpu_custom_call.1']
    #allocation7 [shape = 'u8[65536]{0}', space=vmem, size = 0x10000, scoped, tag = 'input window, operand 3, single buffered']
    #allocation8 [shape = 'u8[32768]{0}', space=vmem, size = 0x8000, scoped, tag = 'input window, operand 5, single buffered']
    #allocation9 [shape = 's32[1]{0}', space=sflag, size = 0x4, scoped, tag = 'scoped memory for tpu_custom_call.1']
    #allocation10 [shape = 'u8[512]{0}', space=vmem, size = 0x400, scoped, tag = 'output window, operand 0, single buffered']
    #allocation11 [shape = 'u8[512]{0}', space=vmem, size = 0x400, scoped, tag = 'output window, operand 1, single buffered']
    #allocation12 [shape = 's32[1]{0}', space=sflag, size = 0x4, scoped, tag = 'scoped memory for tpu_custom_call.1']
    %14 = vsyncpa [#allocation3], 0
    %15 = vsyncpa [#allocation6], 0
    %16 = vsyncpa [#allocation9], 0
    %17 = vsyncpa [#allocation4], 0
    %18 = vsyncpa [#allocation12], 0
    // Predicated region
    $region2: #{tpu_custom_call.1} parent=1 // pred_check
      _
    $region3: #{tpu_custom_call.1} parent=1 // pred_check_branch
      %20 = sbr.rel (0) target = $region5
    $region4: #{tpu_custom_call.1} parent=1 // pred_region
      %s22 = ssub.s32 224, 224
      %23 = vsyncadd [#allocation3], %s22
      %s25 = sshll.u32 [#allocation2], 4
      %s26 = int_to_ptr.vmem [resolvable:$true] %s25
      %28 = dma.hbm_to_vmem [thread:$0]  %s0, 224, %s26, [#allocation3]
    $region5: #{tpu_custom_call.1} parent=1 // pred_fallthru
      _
    // Predicated region
    $region6: #{tpu_custom_call.1} parent=1 // pred_check
      _
    $region7: #{tpu_custom_call.1} parent=1 // pred_check_branch
      %30 = sbr.rel (0) target = $region9
    $region8: #{tpu_custom_call.1} parent=1 // pred_region
      %s32 = ssub.s32 12544, 12544
      %33 = vsyncadd [#allocation6], %s32
      %s34 = sshll.u32 [#allocation5], 4
      %s35 = int_to_ptr.vmem [resolvable:$true] %s34
      %40 = dma.hbm_to_vmem [thread:$0]  %s1, 12544, %s35, [#allocation6], 128, 128, 8
    $region9: #{tpu_custom_call.1} parent=1 // pred_fallthru
      _
    // Predicated region
    $region10: #{tpu_custom_call.1} parent=1 // pred_check
      _
    $region11: #{tpu_custom_call.1} parent=1 // pred_check_branch
      %42 = sbr.rel (0) target = $region13
    $region12: #{tpu_custom_call.1} parent=1 // pred_region
      _
    $region13: #{tpu_custom_call.1} parent=1 // pred_fallthru
      _
    // Predicated region
    $region14: #{tpu_custom_call.1} parent=1 // pred_check
      _
    $region15: #{tpu_custom_call.1} parent=1 // pred_check_branch
      %44 = sbr.rel (0) target = $region17
    $region16: #{tpu_custom_call.1} parent=1 // pred_region
      %s46 = ssub.s32 2048, 2048
      %47 = vsyncadd [#allocation6], %s46
      %s48 = sshll.u32 [#allocation7], 4
      %s49 = int_to_ptr.vmem [resolvable:$true] %s48
      %54 = dma.hbm_to_vmem [thread:$0]  %s3, 2048, %s49, [#allocation6], 64, 64, 4
    $region17: #{tpu_custom_call.1} parent=1 // pred_fallthru
      _
    // Predicated region
    $region18: #{tpu_custom_call.1} parent=1 // pred_check
      _
    $region19: #{tpu_custom_call.1} parent=1 // pred_check_branch
      %56 = sbr.rel (0) target = $region21
    $region20: #{tpu_custom_call.1} parent=1 // pred_region
      _
    $region21: #{tpu_custom_call.1} parent=1 // pred_fallthru
      _
    // Predicated region
    $region22: #{tpu_custom_call.1} parent=1 // pred_check
      _
    $region23: #{tpu_custom_call.1} parent=1 // pred_check_branch
      %58 = sbr.rel (0) target = $region25
    $region24: #{tpu_custom_call.1} parent=1 // pred_region
      %s60 = ssub.s32 1024, 1024
      %61 = vsyncadd [#allocation9], %s60
      %s62 = sshll.u32 [#allocation8], 4
      %s63 = int_to_ptr.vmem [resolvable:$true] %s62
      %68 = dma.hbm_to_vmem [thread:$0]  %s5, 1024, %s63, [#allocation9], 64, 64, 4
    $region25: #{tpu_custom_call.1} parent=1 // pred_fallthru
      _
    // Predicated region
    $region26: #{tpu_custom_call.1} parent=1 // pred_check
      _
    $region27: #{tpu_custom_call.1} parent=1 // pred_check_branch
      %70 = sbr.rel (0) target = $region29
    $region28: #{tpu_custom_call.1} parent=1 // pred_region
      _
    $region29: #{tpu_custom_call.1} parent=1 // pred_fallthru
      _
    // Predicated region
    $region30: #{tpu_custom_call.1} parent=1 // pred_check
      _
    $region31: #{tpu_custom_call.1} parent=1 // pred_check_branch
      %72 = sbr.rel (0) target = $region33
    $region32: #{tpu_custom_call.1} parent=1 // pred_region
      %73 = dma.done [#allocation3], 224
    $region33: #{tpu_custom_call.1} parent=1 // pred_fallthru
      _
    // Predicated region
    $region34: #{tpu_custom_call.1} parent=1 // pred_check
      _
    $region35: #{tpu_custom_call.1} parent=1 // pred_check_branch
      %75 = sbr.rel (0) target = $region37
    $region36: #{tpu_custom_call.1} parent=1 // pred_region
      %76 = dma.done [#allocation6], 12544
    $region37: #{tpu_custom_call.1} parent=1 // pred_fallthru
      _
    // Predicated region
    $region38: #{tpu_custom_call.1} parent=1 // pred_check
      _
    $region39: #{tpu_custom_call.1} parent=1 // pred_check_branch
      %78 = sbr.rel (0) target = $region41
    $region40: #{tpu_custom_call.1} parent=1 // pred_region
      %79 = dma.done [#allocation6], 2048
    $region41: #{tpu_custom_call.1} parent=1 // pred_fallthru
      _
    // Predicated region
    $region42: #{tpu_custom_call.1} parent=1 // pred_check
      _
    $region43: #{tpu_custom_call.1} parent=1 // pred_check_branch
      %81 = sbr.rel (0) target = $region45
    $region44: #{tpu_custom_call.1} parent=1 // pred_region
      %82 = dma.done [#allocation9], 1024
    $region45: #{tpu_custom_call.1} parent=1 // pred_fallthru
      _
    %v84 = vld [vmem:[#allocation2] sm:$0xff]
    %v85 = vld [vmem:[#allocation2 + $0x8] sm:$0x3f]
    %v88 = vcombine.high %v84, %v84
    %v90 = vunpack.c.l.s4 1983009808
    %v91 = vunpack.c.0.s8 %v90
    %v92 = vlaneseq
    %v93 = vshrl.u32 %v92, 7
    %v94 = vsub.s32 %v91, %v93
    %v95 = vrot.slane %v84, %v94
    %v97 = vunpack.c.l.s4 1983009808
    %v98 = vunpack.c.0.s8 %v97
    %v99 = vlaneseq
    %v100 = vshrl.u32 %v99, 7
    %v101 = vsub.s32 %v98, %v100
    %v102 = vrot.slane %v88, %v101
    %v103 = vcombine.high %v95, %v95
    %v104 = vcombine.high %v102, %v102
    %v105 = vcombine.high %v85, %v85
    %v107 = vunpack.c.l.s4 1983009808
    %v108 = vunpack.c.0.s8 %v107
    %v109 = vlaneseq
    %v110 = vshrl.u32 %v109, 7
    %v111 = vsub.s32 %v108, %v110
    %v112 = vrot.slane %v85, %v111
    %v114 = vunpack.c.l.s4 1983009808
    %v115 = vunpack.c.0.s8 %v114
    %v116 = vlaneseq
    %v117 = vshrl.u32 %v116, 7
    %v118 = vsub.s32 %v115, %v117
    %v119 = vrot.slane %v105, %v118
    %v120 = vcombine.high %v112, %v112
    %v128 = vpack.c.bf16 %v95, %v95
    %v129 = vpack.c.bf16 %v103, %v103
    %v130 = vpack.c.bf16 %v102, %v102
    %v131 = vpack.c.bf16 %v104, %v104
    %v132 = vpack.c.bf16 %v112, %v112
    %v133 = vpack.c.bf16 %v120, %v120
    %v134 = vpack.c.bf16 %v119, %v119
    %v135 = vld [vmem:[#allocation5] sm:$0xff]
    %v136 = vld [vmem:[#allocation5 + $0x8] sm:$0xff]
    %v137 = vld [vmem:[#allocation5 + $0x10] sm:$0xff]
    %v138 = vld [vmem:[#allocation5 + $0x18] sm:$0xff]
    %v139 = vld [vmem:[#allocation5 + $0x20] sm:$0xff]
    %v140 = vld [vmem:[#allocation5 + $0x28] sm:$0xff]
    %v141 = vld [vmem:[#allocation5 + $0x30] sm:$0xff]
    %v142 = vld [vmem:[#allocation5 + $0x38] sm:$0xff]
    %v143 = vld [vmem:[#allocation5 + $0x40] sm:$0xff]
    %v144 = vld [vmem:[#allocation5 + $0x48] sm:$0xff]
    %v145 = vld [vmem:[#allocation5 + $0x50] sm:$0xff]
    %v146 = vld [vmem:[#allocation5 + $0x58] sm:$0xff]
    %v147 = vld [vmem:[#allocation5 + $0x60] sm:$0xff]
    %v148 = vld [vmem:[#allocation5 + $0x68] sm:$0xff]
    %v149 = vld [vmem:[#allocation5 + $0x70] sm:$0xff]
    %v150 = vld [vmem:[#allocation5 + $0x78] sm:$0xff]
    %v151 = vld [vmem:[#allocation5 + $0x80] sm:$0xff]
    %v152 = vld [vmem:[#allocation5 + $0x88] sm:$0xff]
    %v153 = vld [vmem:[#allocation5 + $0x90] sm:$0xff]
    %v154 = vld [vmem:[#allocation5 + $0x98] sm:$0xff]
    %v155 = vld [vmem:[#allocation5 + $0xa0] sm:$0xff]
    %v156 = vld [vmem:[#allocation5 + $0xa8] sm:$0xff]
    %v157 = vld [vmem:[#allocation5 + $0xb0] sm:$0xff]
    %v158 = vld [vmem:[#allocation5 + $0xb8] sm:$0xff]
    %v159 = vld [vmem:[#allocation5 + $0xc0] sm:$0xff]
    %v160 = vld [vmem:[#allocation5 + $0xc8] sm:$0xff]
    %v161 = vld [vmem:[#allocation5 + $0xd0] sm:$0xff]
    %v162 = vld [vmem:[#allocation5 + $0xd8] sm:$0xff]
    %v163 = vld [vmem:[#allocation5 + $0xe0] sm:$0xff]
    %v164 = vld [vmem:[#allocation5 + $0xe8] sm:$0xff]
    %v165 = vld [vmem:[#allocation5 + $0xf0] sm:$0xff]
    %v166 = vld [vmem:[#allocation5 + $0xf8] sm:$0xff]
    %v167 = vld [vmem:[#allocation5 + $0x100] sm:$0xff]
    %v168 = vld [vmem:[#allocation5 + $0x108] sm:$0xff]
    %v169 = vld [vmem:[#allocation5 + $0x110] sm:$0xff]
    %v170 = vld [vmem:[#allocation5 + $0x118] sm:$0xff]
    %v171 = vld [vmem:[#allocation5 + $0x120] sm:$0xff]
    %v172 = vld [vmem:[#allocation5 + $0x128] sm:$0xff]
    %v173 = vld [vmem:[#allocation5 + $0x130] sm:$0xff]
    %v174 = vld [vmem:[#allocation5 + $0x138] sm:$0xff]
    %v175 = vld [vmem:[#allocation5 + $0x140] sm:$0xff]
    %v176 = vld [vmem:[#allocation5 + $0x148] sm:$0xff]
    %v177 = vld [vmem:[#allocation5 + $0x150] sm:$0xff]
    %v178 = vld [vmem:[#allocation5 + $0x158] sm:$0xff]
    %v179 = vld [vmem:[#allocation5 + $0x160] sm:$0xff]
    %v180 = vld [vmem:[#allocation5 + $0x168] sm:$0xff]
    %v181 = vld [vmem:[#allocation5 + $0x170] sm:$0xff]
    %v182 = vld [vmem:[#allocation5 + $0x178] sm:$0xff]
    %v183 = vld [vmem:[#allocation5 + $0x180] sm:$0xff]
    %v184 = vld [vmem:[#allocation5 + $0x188] sm:$0xff]
    %v185 = vld [vmem:[#allocation5 + $0x190] sm:$0xff]
    %v186 = vld [vmem:[#allocation5 + $0x198] sm:$0xff]
    %v187 = vld [vmem:[#allocation5 + $0x1a0] sm:$0xff]
    %v188 = vld [vmem:[#allocation5 + $0x1a8] sm:$0xff]
    %v189 = vld [vmem:[#allocation5 + $0x1b0] sm:$0xff]
    %v190 = vld [vmem:[#allocation5 + $0x1b8] sm:$0xff]
    %v191 = vld [vmem:[#allocation5 + $0x1c0] sm:$0xff]
    %v192 = vld [vmem:[#allocation5 + $0x1c8] sm:$0xff]
    %v193 = vld [vmem:[#allocation5 + $0x1d0] sm:$0xff]
    %v194 = vld [vmem:[#allocation5 + $0x1d8] sm:$0xff]
    %v195 = vld [vmem:[#allocation5 + $0x1e0] sm:$0xff]
    %v196 = vld [vmem:[#allocation5 + $0x1e8] sm:$0xff]
    %v197 = vld [vmem:[#allocation5 + $0x1f0] sm:$0xff]
    %v198 = vld [vmem:[#allocation5 + $0x1f8] sm:$0xff]
    %v199 = vld [vmem:[#allocation5 + $0x200] sm:$0xff]
    %v200 = vld [vmem:[#allocation5 + $0x208] sm:$0xff]
    %v201 = vld [vmem:[#allocation5 + $0x210] sm:$0xff]
    %v202 = vld [vmem:[#allocation5 + $0x218] sm:$0xff]
    %v203 = vld [vmem:[#allocation5 + $0x220] sm:$0xff]
    %v204 = vld [vmem:[#allocation5 + $0x228] sm:$0xff]
    %v205 = vld [vmem:[#allocation5 + $0x230] sm:$0xff]
    %v206 = vld [vmem:[#allocation5 + $0x238] sm:$0xff]
    %v207 = vld [vmem:[#allocation5 + $0x240] sm:$0xff]
    %v208 = vld [vmem:[#allocation5 + $0x248] sm:$0xff]
    %v209 = vld [vmem:[#allocation5 + $0x250] sm:$0xff]
    %v210 = vld [vmem:[#allocation5 + $0x258] sm:$0xff]
    %v211 = vld [vmem:[#allocation5 + $0x260] sm:$0xff]
    %v212 = vld [vmem:[#allocation5 + $0x268] sm:$0xff]
    %v213 = vld [vmem:[#allocation5 + $0x270] sm:$0xff]
    %v214 = vld [vmem:[#allocation5 + $0x278] sm:$0xff]
    %v215 = vld [vmem:[#allocation5 + $0x280] sm:$0xff]
    %v216 = vld [vmem:[#allocation5 + $0x288] sm:$0xff]
    %v217 = vld [vmem:[#allocation5 + $0x290] sm:$0xff]
    %v218 = vld [vmem:[#allocation5 + $0x298] sm:$0xff]
    %v219 = vld [vmem:[#allocation5 + $0x2a0] sm:$0xff]
    %v220 = vld [vmem:[#allocation5 + $0x2a8] sm:$0xff]
    %v221 = vld [vmem:[#allocation5 + $0x2b0] sm:$0xff]
    %v222 = vld [vmem:[#allocation5 + $0x2b8] sm:$0xff]
    %v223 = vld [vmem:[#allocation5 + $0x2c0] sm:$0xff]
    %v224 = vld [vmem:[#allocation5 + $0x2c8] sm:$0xff]
    %v225 = vld [vmem:[#allocation5 + $0x2d0] sm:$0xff]
    %v226 = vld [vmem:[#allocation5 + $0x2d8] sm:$0xff]
    %v227 = vld [vmem:[#allocation5 + $0x2e0] sm:$0xff]
    %v228 = vld [vmem:[#allocation5 + $0x2e8] sm:$0xff]
    %v229 = vld [vmem:[#allocation5 + $0x2f0] sm:$0xff]
    %v230 = vld [vmem:[#allocation5 + $0x2f8] sm:$0xff]
    %v231 = vld [vmem:[#allocation5 + $0x300] sm:$0xff]
    %v232 = vld [vmem:[#allocation5 + $0x308] sm:$0xff]
    %v233 = vld [vmem:[%s2] sm:$0x3]
    %v235 = vlaneseq
    %v236 = vshrl.u32 %v235, 7
    %v237 = vsub.s32 0, %v236
    %v238 = vrot.slane %v233, %v237
    %v239 = vlaneseq
    %v240 = vshrl.u32 %v239, 7
    %v241 = vsub.s32 1, %v240
    %v242 = vrot.slane %v233, %v241
    %v343 = vunpack.c.l.b16 %v135
    %v344 = vunpack.c.h.b16 %v135
    %v345 = vunpack.c.l.b16 %v136
    %v346 = vunpack.c.h.b16 %v136
    %v347 = vunpack.c.l.b16 %v137
    %v348 = vunpack.c.h.b16 %v137
    %v349 = vunpack.c.l.b16 %v138
    %v350 = vunpack.c.h.b16 %v138
    %v351 = vunpack.c.l.b16 %v139
    %v352 = vunpack.c.h.b16 %v139
    %v353 = vunpack.c.l.b16 %v140
    %v354 = vunpack.c.h.b16 %v140
    %v355 = vunpack.c.l.b16 %v141
    %v356 = vunpack.c.h.b16 %v141
    %v357 = vunpack.c.l.b16 %v142
    %v358 = vunpack.c.h.b16 %v142
    %v359 = vunpack.c.l.b16 %v143
    %v360 = vunpack.c.h.b16 %v143
    %v361 = vunpack.c.l.b16 %v144
    %v362 = vunpack.c.h.b16 %v144
    %v363 = vunpack.c.l.b16 %v145
    %v364 = vunpack.c.h.b16 %v145
    %v365 = vunpack.c.l.b16 %v146
    %v366 = vunpack.c.h.b16 %v146
    %v367 = vunpack.c.l.b16 %v147
    %v368 = vunpack.c.h.b16 %v147
    %v369 = vunpack.c.l.b16 %v148
    %v370 = vunpack.c.h.b16 %v148
    %v371 = vunpack.c.l.b16 %v149
    %v372 = vunpack.c.h.b16 %v149
    %v373 = vunpack.c.l.b16 %v150
    %v374 = vunpack.c.h.b16 %v150
    %v375 = vunpack.c.l.b16 %v151
    %v376 = vunpack.c.h.b16 %v151
    %v377 = vunpack.c.l.b16 %v152
    %v378 = vunpack.c.h.b16 %v152
    %v379 = vunpack.c.l.b16 %v153
    %v380 = vunpack.c.h.b16 %v153
    %v381 = vunpack.c.l.b16 %v154
    %v382 = vunpack.c.h.b16 %v154
    %v383 = vunpack.c.l.b16 %v155
    %v384 = vunpack.c.h.b16 %v155
    %v385 = vunpack.c.l.b16 %v156
    %v386 = vunpack.c.h.b16 %v156
    %v387 = vunpack.c.l.b16 %v157
    %v388 = vunpack.c.h.b16 %v157
    %v389 = vunpack.c.l.b16 %v158
    %v390 = vunpack.c.h.b16 %v158
    %v391 = vunpack.c.l.b16 %v159
    %v392 = vunpack.c.h.b16 %v159
    %v393 = vunpack.c.l.b16 %v160
    %v394 = vunpack.c.h.b16 %v160
    %v395 = vunpack.c.l.b16 %v161
    %v396 = vunpack.c.h.b16 %v161
    %v397 = vunpack.c.l.b16 %v162
    %v398 = vunpack.c.h.b16 %v162
    %v399 = vunpack.c.l.b16 %v163
    %v400 = vunpack.c.h.b16 %v163
    %v401 = vunpack.c.l.b16 %v164
    %v402 = vunpack.c.h.b16 %v164
    %v403 = vunpack.c.l.b16 %v165
    %v404 = vunpack.c.h.b16 %v165
    %v405 = vunpack.c.l.b16 %v166
    %v406 = vunpack.c.h.b16 %v166
    %v407 = vunpack.c.l.b16 %v167
    %v408 = vunpack.c.h.b16 %v167
    %v409 = vunpack.c.l.b16 %v168
    %v410 = vunpack.c.h.b16 %v168
    %v411 = vunpack.c.l.b16 %v169
    %v412 = vunpack.c.h.b16 %v169
    %v413 = vunpack.c.l.b16 %v170
    %v414 = vunpack.c.h.b16 %v170
    %v415 = vunpack.c.l.b16 %v171
    %v416 = vunpack.c.h.b16 %v171
    %v417 = vunpack.c.l.b16 %v172
    %v418 = vunpack.c.h.b16 %v172
    %v419 = vunpack.c.l.b16 %v173
    %v420 = vunpack.c.h.b16 %v173
    %v421 = vunpack.c.l.b16 %v174
    %v422 = vunpack.c.h.b16 %v174
    %v423 = vunpack.c.l.b16 %v175
    %v424 = vunpack.c.h.b16 %v175
    %v425 = vunpack.c.l.b16 %v176
    %v426 = vunpack.c.h.b16 %v176
    %v427 = vunpack.c.l.b16 %v177
    %v428 = vunpack.c.h.b16 %v177
    %v429 = vunpack.c.l.b16 %v178
    %v430 = vunpack.c.h.b16 %v178
    %v431 = vunpack.c.l.b16 %v179
    %v432 = vunpack.c.h.b16 %v179
    %v433 = vunpack.c.l.b16 %v180
    %v434 = vunpack.c.h.b16 %v180
    %v435 = vunpack.c.l.b16 %v181
    %v436 = vunpack.c.h.b16 %v181
    %v437 = vunpack.c.l.b16 %v182
    %v438 = vunpack.c.h.b16 %v182
    %v439 = vunpack.c.l.b16 %v183
    %v440 = vunpack.c.h.b16 %v183
    %v441 = vunpack.c.l.b16 %v184
    %v442 = vunpack.c.h.b16 %v184
    %v443 = vunpack.c.l.b16 %v185
    %v444 = vunpack.c.h.b16 %v185
    %v445 = vunpack.c.l.b16 %v186
    %v446 = vunpack.c.h.b16 %v186
    %v447 = vunpack.c.l.b16 %v187
    %v448 = vunpack.c.h.b16 %v187
    %v449 = vunpack.c.l.b16 %v188
    %v450 = vunpack.c.h.b16 %v188
    %v451 = vunpack.c.l.b16 %v189
    %v452 = vunpack.c.h.b16 %v189
    %v453 = vunpack.c.l.b16 %v190
    %v454 = vunpack.c.h.b16 %v190
    %v455 = vunpack.c.l.b16 %v191
    %v456 = vunpack.c.h.b16 %v191
    %v457 = vunpack.c.l.b16 %v192
    %v458 = vunpack.c.h.b16 %v192
    %v459 = vunpack.c.l.b16 %v193
    %v460 = vunpack.c.h.b16 %v193
    %v461 = vunpack.c.l.b16 %v194
    %v462 = vunpack.c.h.b16 %v194
    %v463 = vunpack.c.l.b16 %v195
    %v464 = vunpack.c.h.b16 %v195
    %v465 = vunpack.c.l.b16 %v196
    %v466 = vunpack.c.h.b16 %v196
    %v467 = vunpack.c.l.b16 %v197
    %v468 = vunpack.c.h.b16 %v197
    %v469 = vunpack.c.l.b16 %v198
    %v470 = vunpack.c.h.b16 %v198
    %v471 = vunpack.c.l.b16 %v199
    %v472 = vunpack.c.h.b16 %v199
    %v473 = vunpack.c.l.b16 %v200
    %v474 = vunpack.c.h.b16 %v200
    %v475 = vunpack.c.l.b16 %v201
    %v476 = vunpack.c.h.b16 %v201
    %v477 = vunpack.c.l.b16 %v202
    %v478 = vunpack.c.h.b16 %v202
    %v479 = vunpack.c.l.b16 %v203
    %v480 = vunpack.c.h.b16 %v203
    %v481 = vunpack.c.l.b16 %v204
    %v482 = vunpack.c.h.b16 %v204
    %v483 = vunpack.c.l.b16 %v205
    %v484 = vunpack.c.h.b16 %v205
    %v485 = vunpack.c.l.b16 %v206
    %v486 = vunpack.c.h.b16 %v206
    %v487 = vunpack.c.l.b16 %v207
    %v488 = vunpack.c.h.b16 %v207
    %v489 = vunpack.c.l.b16 %v208
    %v490 = vunpack.c.h.b16 %v208
    %v491 = vunpack.c.l.b16 %v209
    %v492 = vunpack.c.h.b16 %v209
    %v493 = vunpack.c.l.b16 %v210
    %v494 = vunpack.c.h.b16 %v210
    %v495 = vunpack.c.l.b16 %v211
    %v496 = vunpack.c.h.b16 %v211
    %v497 = vunpack.c.l.b16 %v212
    %v498 = vunpack.c.h.b16 %v212
    %v499 = vunpack.c.l.b16 %v213
    %v500 = vunpack.c.h.b16 %v213
    %v501 = vunpack.c.l.b16 %v214
    %v502 = vunpack.c.h.b16 %v214
    %v503 = vunpack.c.l.b16 %v215
    %v504 = vunpack.c.h.b16 %v215
    %v505 = vunpack.c.l.b16 %v216
    %v506 = vunpack.c.h.b16 %v216
    %v507 = vunpack.c.l.b16 %v217
    %v508 = vunpack.c.h.b16 %v217
    %v509 = vunpack.c.l.b16 %v218
    %v510 = vunpack.c.h.b16 %v218
    %v511 = vunpack.c.l.b16 %v219
    %v512 = vunpack.c.h.b16 %v219
    %v513 = vunpack.c.l.b16 %v220
    %v514 = vunpack.c.h.b16 %v220
    %v515 = vunpack.c.l.b16 %v221
    %v516 = vunpack.c.h.b16 %v221
    %v517 = vunpack.c.l.b16 %v222
    %v518 = vunpack.c.h.b16 %v222
    %v519 = vunpack.c.l.b16 %v223
    %v520 = vunpack.c.h.b16 %v223
    %v521 = vunpack.c.l.b16 %v224
    %v522 = vunpack.c.h.b16 %v224
    %v523 = vunpack.c.l.b16 %v225
    %v524 = vunpack.c.h.b16 %v225
    %v525 = vunpack.c.l.b16 %v226
    %v526 = vunpack.c.h.b16 %v226
    %v527 = vunpack.c.l.b16 %v227
    %v528 = vunpack.c.h.b16 %v227
    %v529 = vunpack.c.l.b16 %v228
    %v530 = vunpack.c.h.b16 %v228
    %v531 = vunpack.c.l.b16 %v229
    %v532 = vunpack.c.h.b16 %v229
    %v533 = vunpack.c.l.b16 %v230
    %v534 = vunpack.c.h.b16 %v230
    %v535 = vunpack.c.l.b16 %v231
    %v536 = vunpack.c.h.b16 %v231
    %v537 = vunpack.c.l.b16 %v232
    %v538 = vunpack.c.h.b16 %v232
    %v539 = vpack.c.b16 %v345, %v343
    %v540 = vpack.c.b16 %v346, %v344
    %v541 = vpack.c.b16 %v349, %v347
    %v542 = vpack.c.b16 %v350, %v348
    %v543 = vpack.c.b16 %v353, %v351
    %v544 = vpack.c.b16 %v354, %v352
    %v545 = vpack.c.b16 %v357, %v355
    %v546 = vpack.c.b16 %v358, %v356
    %v547 = vpack.c.b16 %v361, %v359
    %v548 = vpack.c.b16 %v362, %v360
    %v549 = vpack.c.b16 %v365, %v363
    %v550 = vpack.c.b16 %v366, %v364
    %v551 = vpack.c.b16 %v369, %v367
    %v552 = vpack.c.b16 %v370, %v368
    %v553 = vpack.c.b16 %v373, %v371
    %v554 = vpack.c.b16 %v374, %v372
    %v555 = vpack.c.b16 %v377, %v375
    %v556 = vpack.c.b16 %v378, %v376
    %v557 = vpack.c.b16 %v381, %v379
    %v558 = vpack.c.b16 %v382, %v380
    %v559 = vpack.c.b16 %v385, %v383
    %v560 = vpack.c.b16 %v386, %v384
    %v561 = vpack.c.b16 %v389, %v387
    %v562 = vpack.c.b16 %v390, %v388
    %v563 = vpack.c.b16 %v393, %v391
    %v564 = vpack.c.b16 %v394, %v392
    %v565 = vpack.c.b16 %v397, %v395
    %v566 = vpack.c.b16 %v398, %v396
    %v567 = vpack.c.b16 %v401, %v399
    %v568 = vpack.c.b16 %v402, %v400
    %v569 = vpack.c.b16 %v405, %v403
    %v570 = vpack.c.b16 %v406, %v404
    %v571 = vpack.c.b16 %v409, %v407
    %v572 = vpack.c.b16 %v410, %v408
    %v573 = vpack.c.b16 %v413, %v411
    %v574 = vpack.c.b16 %v414, %v412
    %v575 = vpack.c.b16 %v417, %v415
    %v576 = vpack.c.b16 %v418, %v416
    %v577 = vpack.c.b16 %v421, %v419
    %v578 = vpack.c.b16 %v422, %v420
    %v579 = vpack.c.b16 %v425, %v423
    %v580 = vpack.c.b16 %v426, %v424
    %v581 = vpack.c.b16 %v429, %v427
    %v582 = vpack.c.b16 %v430, %v428
    %v583 = vpack.c.b16 %v433, %v431
    %v584 = vpack.c.b16 %v434, %v432
    %v585 = vpack.c.b16 %v437, %v435
    %v586 = vpack.c.b16 %v438, %v436
    %v587 = vpack.c.b16 %v441, %v439
    %v588 = vpack.c.b16 %v442, %v440
    %v589 = vpack.c.b16 %v445, %v443
    %v590 = vpack.c.b16 %v446, %v444
    %v591 = vpack.c.b16 %v449, %v447
    %v592 = vpack.c.b16 %v450, %v448
    %v593 = vpack.c.b16 %v453, %v451
    %v594 = vpack.c.b16 %v454, %v452
    %v595 = vpack.c.b16 %v457, %v455
    %v596 = vpack.c.b16 %v458, %v456
    %v597 = vpack.c.b16 %v461, %v459
    %v598 = vpack.c.b16 %v462, %v460
    %v599 = vpack.c.b16 %v465, %v463
    %v600 = vpack.c.b16 %v466, %v464
    %v601 = vpack.c.b16 %v469, %v467
    %v602 = vpack.c.b16 %v470, %v468
    %v603 = vpack.c.b16 %v473, %v471
    %v604 = vpack.c.b16 %v474, %v472
    %v605 = vpack.c.b16 %v477, %v475
    %v606 = vpack.c.b16 %v478, %v476
    %v607 = vpack.c.b16 %v481, %v479
    %v608 = vpack.c.b16 %v482, %v480
    %v609 = vpack.c.b16 %v485, %v483
    %v610 = vpack.c.b16 %v486, %v484
    %v611 = vpack.c.b16 %v489, %v487
    %v612 = vpack.c.b16 %v490, %v488
    %v613 = vpack.c.b16 %v493, %v491
    %v614 = vpack.c.b16 %v494, %v492
    %v615 = vpack.c.b16 %v497, %v495
    %v616 = vpack.c.b16 %v498, %v496
    %v617 = vpack.c.b16 %v501, %v499
    %v618 = vpack.c.b16 %v502, %v500
    %v619 = vpack.c.b16 %v505, %v503
    %v620 = vpack.c.b16 %v506, %v504
    %v621 = vpack.c.b16 %v509, %v507
    %v622 = vpack.c.b16 %v510, %v508
    %v623 = vpack.c.b16 %v513, %v511
    %v624 = vpack.c.b16 %v514, %v512
    %v625 = vpack.c.b16 %v517, %v515
    %v626 = vpack.c.b16 %v518, %v516
    %v627 = vpack.c.b16 %v521, %v519
    %v628 = vpack.c.b16 %v522, %v520
    %v629 = vpack.c.b16 %v525, %v523
    %v630 = vpack.c.b16 %v526, %v524
    %v631 = vpack.c.b16 %v529, %v527
    %v632 = vpack.c.b16 %v530, %v528
    %v633 = vpack.c.b16 %v533, %v531
    %v634 = vpack.c.b16 %v534, %v532
    %v635 = vpack.c.b16 %v537, %v535
    %v636 = vpack.c.b16 %v538, %v536
    %vm735 = vcmask 130048
    %v737 = vsel %vm735, %v134, 0
    %739 = vmatprep.subr.bf16.mxu0 %v540
    %740 = vmatpush1.bf16.msra.mxu0 %v539
    %741 = vmatprep.subr.bf16.mxu0 %v542
    %742 = vmatpush1.bf16.msra.mxu0 %v541
    %743 = vmatprep.subr.bf16.mxu0 %v544
    %744 = vmatpush1.bf16.msra.mxu0 %v543
    %745 = vmatprep.subr.bf16.mxu0 %v546
    %746 = vmatpush1.bf16.msra.mxu0 %v545
    %747 = vmatprep.subr.bf16.mxu0 %v548
    %748 = vmatpush1.bf16.msra.mxu0 %v547
    %749 = vmatprep.subr.bf16.mxu0 %v550
    %750 = vmatpush1.bf16.msra.mxu0 %v549
    %751 = vmatprep.subr.bf16.mxu0 %v552
    %752 = vmatpush1.bf16.msra.mxu0 %v551
    %753 = vmatprep.subr.bf16.mxu0 %v554
    %754 = vmatpush1.bf16.msra.mxu0 %v553
    %755 = vmatprep.subr.bf16.mxu0 %v556
    %756 = vmatpush1.bf16.msra.mxu0 %v555
    %757 = vmatprep.subr.bf16.mxu0 %v558
    %758 = vmatpush1.bf16.msra.mxu0 %v557
    %759 = vmatprep.subr.bf16.mxu0 %v560
    %760 = vmatpush1.bf16.msra.mxu0 %v559
    %761 = vmatprep.subr.bf16.mxu0 %v562
    %762 = vmatpush1.bf16.msra.mxu0 %v561
    %763 = vmatprep.subr.bf16.mxu0 %v564
    %764 = vmatpush1.bf16.msra.mxu0 %v563
    %765 = vmatprep.subr.bf16.mxu0 %v566
    %766 = vmatpush1.bf16.msra.mxu0 %v565
    %767 = vmatprep.subr.bf16.mxu0 %v568
    %768 = vmatpush1.bf16.msra.mxu0 %v567
    %769 = vmatprep.subr.bf16.mxu0 %v570
    %770 = vmatpush1.bf16.msra.mxu0 %v569
    %771 = vmatprep.mubr.bf16.mxu0 %v129
    %772 = vmatmul.mubr.bf16.gmra.mrb[0].mxu0 %v128
    %v773 = vpop.f32.mrb[0].mxu0
    %v774 = vadd.f32 %v238, %v773
    %v775 = vpop.f32.mrb[0].mxu0
    %v776 = vadd.f32 %v242, %v775
    %v777 = vpop.f32.mrb[0].mxu0
    %v778 = vpop.f32.mrb[0].mxu0
    %779 = vdwg.mxu0
    %780 = vmatprep.subr.bf16.mxu0 %v572
    %781 = vmatpush1.bf16.msra.mxu0 %v571
    %782 = vmatprep.subr.bf16.mxu0 %v574
    %783 = vmatpush1.bf16.msra.mxu0 %v573
    %784 = vmatprep.subr.bf16.mxu0 %v576
    %785 = vmatpush1.bf16.msra.mxu0 %v575
    %786 = vmatprep.subr.bf16.mxu0 %v578
    %787 = vmatpush1.bf16.msra.mxu0 %v577
    %788 = vmatprep.subr.bf16.mxu0 %v580
    %789 = vmatpush1.bf16.msra.mxu0 %v579
    %790 = vmatprep.subr.bf16.mxu0 %v582
    %791 = vmatpush1.bf16.msra.mxu0 %v581
    %792 = vmatprep.subr.bf16.mxu0 %v584
    %793 = vmatpush1.bf16.msra.mxu0 %v583
    %794 = vmatprep.subr.bf16.mxu0 %v586
    %795 = vmatpush1.bf16.msra.mxu0 %v585
    %796 = vmatprep.subr.bf16.mxu0 %v588
    %797 = vmatpush1.bf16.msra.mxu0 %v587
    %798 = vmatprep.subr.bf16.mxu0 %v590
    %799 = vmatpush1.bf16.msra.mxu0 %v589
    %800 = vmatprep.subr.bf16.mxu0 %v592
    %801 = vmatpush1.bf16.msra.mxu0 %v591
    %802 = vmatprep.subr.bf16.mxu0 %v594
    %803 = vmatpush1.bf16.msra.mxu0 %v593
    %804 = vmatprep.subr.bf16.mxu0 %v596
    %805 = vmatpush1.bf16.msra.mxu0 %v595
    %806 = vmatprep.subr.bf16.mxu0 %v598
    %807 = vmatpush1.bf16.msra.mxu0 %v597
    %808 = vmatprep.subr.bf16.mxu0 %v600
    %809 = vmatpush1.bf16.msra.mxu0 %v599
    %810 = vmatprep.subr.bf16.mxu0 %v602
    %811 = vmatpush1.bf16.msra.mxu0 %v601
    %812 = vmatprep.mubr.bf16.mxu0 %v131
    %813 = vmatmul.mubr.bf16.gmra.mrb[0].mxu0 %v130
    %v814 = vpop.f32.mrb[0].mxu0
    %v815 = vadd.f32 %v774, %v814
    %v816 = vpop.f32.mrb[0].mxu0
    %v817 = vadd.f32 %v776, %v816
    %v818 = vpop.f32.mrb[0].mxu0
    %v819 = vpop.f32.mrb[0].mxu0
    %820 = vdwg.mxu0
    %821 = vmatprep.subr.bf16.mxu0 %v604
    %822 = vmatpush1.bf16.msra.mxu0 %v603
    %823 = vmatprep.subr.bf16.mxu0 %v606
    %824 = vmatpush1.bf16.msra.mxu0 %v605
    %825 = vmatprep.subr.bf16.mxu0 %v608
    %826 = vmatpush1.bf16.msra.mxu0 %v607
    %827 = vmatprep.subr.bf16.mxu0 %v610
    %828 = vmatpush1.bf16.msra.mxu0 %v609
    %829 = vmatprep.subr.bf16.mxu0 %v612
    %830 = vmatpush1.bf16.msra.mxu0 %v611
    %831 = vmatprep.subr.bf16.mxu0 %v614
    %832 = vmatpush1.bf16.msra.mxu0 %v613
    %833 = vmatprep.subr.bf16.mxu0 %v616
    %834 = vmatpush1.bf16.msra.mxu0 %v615
    %835 = vmatprep.subr.bf16.mxu0 %v618
    %836 = vmatpush1.bf16.msra.mxu0 %v617
    %837 = vmatprep.subr.bf16.mxu0 %v620
    %838 = vmatpush1.bf16.msra.mxu0 %v619
    %839 = vmatprep.subr.bf16.mxu0 %v622
    %840 = vmatpush1.bf16.msra.mxu0 %v621
    %841 = vmatprep.subr.bf16.mxu0 %v624
    %842 = vmatpush1.bf16.msra.mxu0 %v623
    %843 = vmatprep.subr.bf16.mxu0 %v626
    %844 = vmatpush1.bf16.msra.mxu0 %v625
    %845 = vmatprep.subr.bf16.mxu0 %v628
    %846 = vmatpush1.bf16.msra.mxu0 %v627
    %847 = vmatprep.subr.bf16.mxu0 %v630
    %848 = vmatpush1.bf16.msra.mxu0 %v629
    %849 = vmatprep.subr.bf16.mxu0 %v632
    %850 = vmatpush1.bf16.msra.mxu0 %v631
    %851 = vmatprep.subr.bf16.mxu0 %v634
    %852 = vmatpush1.bf16.msra.mxu0 %v633
    %853 = vmatprep.mubr.bf16.mxu0 %v133
    %854 = vmatmul.mubr.bf16.gmra.mrb[0].mxu0 %v132
    %v855 = vpop.f32.mrb[0].mxu0
    %v856 = vadd.f32 %v815, %v855
    %v857 = vpop.f32.mrb[0].mxu0
    %v858 = vadd.f32 %v817, %v857
    %v859 = vpop.f32.mrb[0].mxu0
    %v860 = vpop.f32.mrb[0].mxu0
    %861 = vdwg.mxu0
    %862 = vmatprep.subr.bf16.mxu0 %v636
    %863 = vmatpush1.bf16.msra.mxu0 %v635
    %864 = vmatprep.subr.bf16.mxu0 0
    %865 = vmatpush1.bf16.msra.mxu0 0
    %866 = vmatprep.subr.bf16.mxu0 0
    %867 = vmatpush1.bf16.msra.mxu0 0
    %868 = vmatprep.subr.bf16.mxu0 0
    %869 = vmatpush1.bf16.msra.mxu0 0
    %870 = vmatprep.subr.bf16.mxu0 0
    %871 = vmatpush1.bf16.msra.mxu0 0
    %872 = vmatprep.subr.bf16.mxu0 0
    %873 = vmatpush1.bf16.msra.mxu0 0
    %874 = vmatprep.subr.bf16.mxu0 0
    %875 = vmatpush1.bf16.msra.mxu0 0
    %876 = vmatprep.subr.bf16.mxu0 0
    %877 = vmatpush1.bf16.msra.mxu0 0
    %878 = vmatprep.subr.bf16.mxu0 0
    %879 = vmatpush1.bf16.msra.mxu0 0
    %880 = vmatprep.subr.bf16.mxu0 0
    %881 = vmatpush1.bf16.msra.mxu0 0
    %882 = vmatprep.subr.bf16.mxu0 0
    %883 = vmatpush1.bf16.msra.mxu0 0
    %884 = vmatprep.subr.bf16.mxu0 0
    %885 = vmatpush1.bf16.msra.mxu0 0
    %886 = vmatprep.subr.bf16.mxu0 0
    %887 = vmatpush1.bf16.msra.mxu0 0
    %888 = vmatprep.subr.bf16.mxu0 0
    %889 = vmatpush1.bf16.msra.mxu0 0
    %890 = vmatprep.subr.bf16.mxu0 0
    %891 = vmatpush1.bf16.msra.mxu0 0
    %892 = vmatprep.subr.bf16.mxu0 0
    %893 = vmatpush1.bf16.msra.mxu0 0
    %894 = vmatprep.mubr.bf16.mxu0 0
    %895 = vmatmul.mubr.bf16.gmra.mrb[0].mxu0 %v737
    %v896 = vpop.f32.mrb[0].mxu0
    %v897 = vadd.f32 %v856, %v896
    %v898 = vpop.f32.mrb[0].mxu0
    %v899 = vadd.f32 %v858, %v898
    %v900 = vpop.f32.mrb[0].mxu0
    %v901 = vpop.f32.mrb[0].mxu0
    %902 = vdwg.mxu0
    %v903 = vmax.f32 %v897, 0.0
    %v904 = vmax.f32 %v899, 0.0
    %v905 = vpack.c.bf16 %v903, %v903
    %v906 = vpack.c.bf16 %v904, %v904
    %v907 = vld [vmem:[#allocation7] sm:$0xf]
    %v908 = vld [vmem:[#allocation7 + $0x4] sm:$0xf]
    %v909 = vld [vmem:[#allocation7 + $0x8] sm:$0xf]
    %v910 = vld [vmem:[#allocation7 + $0xc] sm:$0xf]
    %v911 = vld [vmem:[#allocation7 + $0x10] sm:$0xf]
    %v912 = vld [vmem:[#allocation7 + $0x14] sm:$0xf]
    %v913 = vld [vmem:[#allocation7 + $0x18] sm:$0xf]
    %v914 = vld [vmem:[#allocation7 + $0x1c] sm:$0xf]
    %v915 = vld [vmem:[#allocation7 + $0x20] sm:$0xf]
    %v916 = vld [vmem:[#allocation7 + $0x24] sm:$0xf]
    %v917 = vld [vmem:[#allocation7 + $0x28] sm:$0xf]
    %v918 = vld [vmem:[#allocation7 + $0x2c] sm:$0xf]
    %v919 = vld [vmem:[#allocation7 + $0x30] sm:$0xf]
    %v920 = vld [vmem:[#allocation7 + $0x34] sm:$0xf]
    %v921 = vld [vmem:[#allocation7 + $0x38] sm:$0xf]
    %v922 = vld [vmem:[#allocation7 + $0x3c] sm:$0xf]
    %v923 = vld [vmem:[#allocation7 + $0x40] sm:$0xf]
    %v924 = vld [vmem:[#allocation7 + $0x44] sm:$0xf]
    %v925 = vld [vmem:[#allocation7 + $0x48] sm:$0xf]
    %v926 = vld [vmem:[#allocation7 + $0x4c] sm:$0xf]
    %v927 = vld [vmem:[#allocation7 + $0x50] sm:$0xf]
    %v928 = vld [vmem:[#allocation7 + $0x54] sm:$0xf]
    %v929 = vld [vmem:[#allocation7 + $0x58] sm:$0xf]
    %v930 = vld [vmem:[#allocation7 + $0x5c] sm:$0xf]
    %v931 = vld [vmem:[#allocation7 + $0x60] sm:$0xf]
    %v932 = vld [vmem:[#allocation7 + $0x64] sm:$0xf]
    %v933 = vld [vmem:[#allocation7 + $0x68] sm:$0xf]
    %v934 = vld [vmem:[#allocation7 + $0x6c] sm:$0xf]
    %v935 = vld [vmem:[#allocation7 + $0x70] sm:$0xf]
    %v936 = vld [vmem:[#allocation7 + $0x74] sm:$0xf]
    %v937 = vld [vmem:[#allocation7 + $0x78] sm:$0xf]
    %v938 = vld [vmem:[#allocation7 + $0x7c] sm:$0xf]
    %v939 = vld [vmem:[%s4] sm:$0x1]
    %v941 = vlaneseq
    %v942 = vshrl.u32 %v941, 7
    %v943 = vsub.s32 0, %v942
    %v944 = vrot.slane %v939, %v943
    %v978 = vunpack.c.l.b16 %v907
    %v979 = vunpack.c.l.b16 %v908
    %v980 = vunpack.c.l.b16 %v909
    %v981 = vunpack.c.l.b16 %v910
    %v982 = vunpack.c.l.b16 %v911
    %v983 = vunpack.c.l.b16 %v912
    %v984 = vunpack.c.l.b16 %v913
    %v985 = vunpack.c.l.b16 %v914
    %v986 = vunpack.c.l.b16 %v915
    %v987 = vunpack.c.l.b16 %v916
    %v988 = vunpack.c.l.b16 %v917
    %v989 = vunpack.c.l.b16 %v918
    %v990 = vunpack.c.l.b16 %v919
    %v991 = vunpack.c.l.b16 %v920
    %v992 = vunpack.c.l.b16 %v921
    %v993 = vunpack.c.l.b16 %v922
    %v994 = vunpack.c.l.b16 %v923
    %v995 = vunpack.c.l.b16 %v924
    %v996 = vunpack.c.l.b16 %v925
    %v997 = vunpack.c.l.b16 %v926
    %v998 = vunpack.c.l.b16 %v927
    %v999 = vunpack.c.l.b16 %v928
    %v1000 = vunpack.c.l.b16 %v929
    %v1001 = vunpack.c.l.b16 %v930
    %v1002 = vunpack.c.l.b16 %v931
    %v1003 = vunpack.c.l.b16 %v932
    %v1004 = vunpack.c.l.b16 %v933
    %v1005 = vunpack.c.l.b16 %v934
    %v1006 = vunpack.c.l.b16 %v935
    %v1007 = vunpack.c.l.b16 %v936
    %v1008 = vunpack.c.l.b16 %v937
    %v1009 = vunpack.c.l.b16 %v938
    %v1010 = vpack.c.b16 %v979, %v978
    %v1011 = vpack.c.b16 %v981, %v980
    %v1012 = vpack.c.b16 %v983, %v982
    %v1013 = vpack.c.b16 %v985, %v984
    %v1014 = vpack.c.b16 %v987, %v986
    %v1015 = vpack.c.b16 %v989, %v988
    %v1016 = vpack.c.b16 %v991, %v990
    %v1017 = vpack.c.b16 %v993, %v992
    %v1018 = vpack.c.b16 %v995, %v994
    %v1019 = vpack.c.b16 %v997, %v996
    %v1020 = vpack.c.b16 %v999, %v998
    %v1021 = vpack.c.b16 %v1001, %v1000
    %v1022 = vpack.c.b16 %v1003, %v1002
    %v1023 = vpack.c.b16 %v1005, %v1004
    %v1024 = vpack.c.b16 %v1007, %v1006
    %v1025 = vpack.c.b16 %v1009, %v1008
    %1042 = vmatprep.subr.bf16.mxu0 0
    %1043 = vmatpush1.bf16.msra.mxu0 %v1010
    %1044 = vmatprep.subr.bf16.mxu0 0
    %1045 = vmatpush1.bf16.msra.mxu0 %v1011
    %1046 = vmatprep.subr.bf16.mxu0 0
    %1047 = vmatpush1.bf16.msra.mxu0 %v1012
    %1048 = vmatprep.subr.bf16.mxu0 0
    %1049 = vmatpush1.bf16.msra.mxu0 %v1013
    %1050 = vmatprep.subr.bf16.mxu0 0
    %1051 = vmatpush1.bf16.msra.mxu0 %v1014
    %1052 = vmatprep.subr.bf16.mxu0 0
    %1053 = vmatpush1.bf16.msra.mxu0 %v1015
    %1054 = vmatprep.subr.bf16.mxu0 0
    %1055 = vmatpush1.bf16.msra.mxu0 %v1016
    %1056 = vmatprep.subr.bf16.mxu0 0
    %1057 = vmatpush1.bf16.msra.mxu0 %v1017
    %1058 = vmatprep.subr.bf16.mxu0 0
    %1059 = vmatpush1.bf16.msra.mxu0 %v1018
    %1060 = vmatprep.subr.bf16.mxu0 0
    %1061 = vmatpush1.bf16.msra.mxu0 %v1019
    %1062 = vmatprep.subr.bf16.mxu0 0
    %1063 = vmatpush1.bf16.msra.mxu0 %v1020
    %1064 = vmatprep.subr.bf16.mxu0 0
    %1065 = vmatpush1.bf16.msra.mxu0 %v1021
    %1066 = vmatprep.subr.bf16.mxu0 0
    %1067 = vmatpush1.bf16.msra.mxu0 %v1022
    %1068 = vmatprep.subr.bf16.mxu0 0
    %1069 = vmatpush1.bf16.msra.mxu0 %v1023
    %1070 = vmatprep.subr.bf16.mxu0 0
    %1071 = vmatpush1.bf16.msra.mxu0 %v1024
    %1072 = vmatprep.subr.bf16.mxu0 0
    %1073 = vmatpush1.bf16.msra.mxu0 %v1025
    %1074 = vmatprep.mubr.bf16.mxu0 %v906
    %1075 = vmatmul.mubr.bf16.gmra.mrb[0].mxu0 %v905
    %v1076 = vpop.f32.mrb[0].mxu0
    %v1077 = vadd.f32 %v944, %v1076
    %v1078 = vpop.f32.mrb[0].mxu0
    %v1079 = vpop.f32.mrb[0].mxu0
    %v1080 = vpop.f32.mrb[0].mxu0
    %1081 = vdwg.mxu0
    %v1082 = vmax.f32 %v1077, 0.0
    %v1083 = vpack.c.bf16 %v1082, %v1082
    %v1084 = vld [vmem:[#allocation8] sm:$0xf]
    %v1085 = vld [vmem:[#allocation8 + $0x4] sm:$0xf]
    %v1086 = vld [vmem:[#allocation8 + $0x8] sm:$0xf]
    %v1087 = vld [vmem:[#allocation8 + $0xc] sm:$0xf]
    %v1088 = vld [vmem:[#allocation8 + $0x10] sm:$0xf]
    %v1089 = vld [vmem:[#allocation8 + $0x14] sm:$0xf]
    %v1090 = vld [vmem:[#allocation8 + $0x18] sm:$0xf]
    %v1091 = vld [vmem:[#allocation8 + $0x1c] sm:$0xf]
    %v1092 = vld [vmem:[#allocation8 + $0x20] sm:$0xf]
    %v1093 = vld [vmem:[#allocation8 + $0x24] sm:$0xf]
    %v1094 = vld [vmem:[#allocation8 + $0x28] sm:$0xf]
    %v1095 = vld [vmem:[#allocation8 + $0x2c] sm:$0xf]
    %v1096 = vld [vmem:[#allocation8 + $0x30] sm:$0xf]
    %v1097 = vld [vmem:[#allocation8 + $0x34] sm:$0xf]
    %v1098 = vld [vmem:[#allocation8 + $0x38] sm:$0xf]
    %v1099 = vld [vmem:[#allocation8 + $0x3c] sm:$0xf]
    %v1100 = vld [vmem:[%s6] sm:$0x1]
    %v1102 = vlaneseq
    %v1103 = vshrl.u32 %v1102, 7
    %v1104 = vsub.s32 0, %v1103
    %v1105 = vrot.slane %v1100, %v1104
    %v1123 = vunpack.c.l.b16 %v1084
    %v1124 = vunpack.c.l.b16 %v1085
    %v1125 = vunpack.c.l.b16 %v1086
    %v1126 = vunpack.c.l.b16 %v1087
    %v1127 = vunpack.c.l.b16 %v1088
    %v1128 = vunpack.c.l.b16 %v1089
    %v1129 = vunpack.c.l.b16 %v1090
    %v1130 = vunpack.c.l.b16 %v1091
    %v1131 = vunpack.c.l.b16 %v1092
    %v1132 = vunpack.c.l.b16 %v1093
    %v1133 = vunpack.c.l.b16 %v1094
    %v1134 = vunpack.c.l.b16 %v1095
    %v1135 = vunpack.c.l.b16 %v1096
    %v1136 = vunpack.c.l.b16 %v1097
    %v1137 = vunpack.c.l.b16 %v1098
    %v1138 = vunpack.c.l.b16 %v1099
    %v1139 = vpack.c.b16 %v1124, %v1123
    %v1140 = vpack.c.b16 %v1126, %v1125
    %v1141 = vpack.c.b16 %v1128, %v1127
    %v1142 = vpack.c.b16 %v1130, %v1129
    %v1143 = vpack.c.b16 %v1132, %v1131
    %v1144 = vpack.c.b16 %v1134, %v1133
    %v1145 = vpack.c.b16 %v1136, %v1135
    %v1146 = vpack.c.b16 %v1138, %v1137
    %1155 = vmatprep.subr.bf16.mxu0 0
    %1156 = vmatpush1.bf16.msra.mxu0 %v1139
    %1157 = vmatprep.subr.bf16.mxu0 0
    %1158 = vmatpush1.bf16.msra.mxu0 %v1140
    %1159 = vmatprep.subr.bf16.mxu0 0
    %1160 = vmatpush1.bf16.msra.mxu0 %v1141
    %1161 = vmatprep.subr.bf16.mxu0 0
    %1162 = vmatpush1.bf16.msra.mxu0 %v1142
    %1163 = vmatprep.subr.bf16.mxu0 0
    %1164 = vmatpush1.bf16.msra.mxu0 %v1143
    %1165 = vmatprep.subr.bf16.mxu0 0
    %1166 = vmatpush1.bf16.msra.mxu0 %v1144
    %1167 = vmatprep.subr.bf16.mxu0 0
    %1168 = vmatpush1.bf16.msra.mxu0 %v1145
    %1169 = vmatprep.subr.bf16.mxu0 0
    %1170 = vmatpush1.bf16.msra.mxu0 %v1146
    %1171 = vmatprep.subr.bf16.mxu0 0
    %1172 = vmatpush1.bf16.msra.mxu0 0
    %1173 = vmatprep.subr.bf16.mxu0 0
    %1174 = vmatpush1.bf16.msra.mxu0 0
    %1175 = vmatprep.subr.bf16.mxu0 0
    %1176 = vmatpush1.bf16.msra.mxu0 0
    %1177 = vmatprep.subr.bf16.mxu0 0
    %1178 = vmatpush1.bf16.msra.mxu0 0
    %1179 = vmatprep.subr.bf16.mxu0 0
    %1180 = vmatpush1.bf16.msra.mxu0 0
    %1181 = vmatprep.subr.bf16.mxu0 0
    %1182 = vmatpush1.bf16.msra.mxu0 0
    %1183 = vmatprep.subr.bf16.mxu0 0
    %1184 = vmatpush1.bf16.msra.mxu0 0
    %1185 = vmatprep.subr.bf16.mxu0 0
    %1186 = vmatpush1.bf16.msra.mxu0 0
    %1187 = vmatprep.mubr.bf16.mxu0 0
    %1188 = vmatmul.mubr.bf16.gmra.mrb[0].mxu0 %v1083
    %v1189 = vpop.f32.mrb[0].mxu0
    %v1190 = vadd.f32 %v1105, %v1189
    %v1191 = vpop.f32.mrb[0].mxu0
    %v1192 = vpop.f32.mrb[0].mxu0
    %v1193 = vpop.f32.mrb[0].mxu0
    %1194 = vdwg.mxu0
    %1195 = vst [vmem:[#allocation11] sm:$0x1] %v1083
    %v1196 = vpack.c.bf16 %v1190, %v1190
    %1197 = vst [vmem:[#allocation10] sm:$0x1] %v1196
    // Predicated region
    $region46: #{tpu_custom_call.1} parent=1 // pred_check
      _
    $region47: #{tpu_custom_call.1} parent=1 // pred_check_branch
      %1199 = sbr.rel (0) target = $region49
    $region48: #{tpu_custom_call.1} parent=1 // pred_region
      %s1201 = ssub.s32 16, 16
      %1202 = vsyncadd [#allocation4], %s1201
      %s1204 = sshll.u32 [#allocation10], 4
      %s1205 = int_to_ptr.vmem [resolvable:$true] %s1204
      %1207 = dma.vmem_to_hbm [thread:$0]  %s1205, 16, %s7, [#allocation4]
    $region49: #{tpu_custom_call.1} parent=1 // pred_fallthru
      _
    // Predicated region
    $region50: #{tpu_custom_call.1} parent=1 // pred_check
      _
    $region51: #{tpu_custom_call.1} parent=1 // pred_check_branch
      %1209 = sbr.rel (0) target = $region53
    $region52: #{tpu_custom_call.1} parent=1 // pred_region
      %s1211 = ssub.s32 16, 16
      %1212 = vsyncadd [#allocation12], %s1211
      %s1214 = sshll.u32 [#allocation11], 4
      %s1215 = int_to_ptr.vmem [resolvable:$true] %s1214
      %1217 = dma.vmem_to_hbm [thread:$0]  %s1215, 16, %s8, [#allocation12]
    $region53: #{tpu_custom_call.1} parent=1 // pred_fallthru
      _
    // Predicated region
    $region54: #{tpu_custom_call.1} parent=1 // pred_check
      _
    $region55: #{tpu_custom_call.1} parent=1 // pred_check_branch
      %1219 = sbr.rel (0) target = $region57
    $region56: #{tpu_custom_call.1} parent=1 // pred_region
      %1220 = dma.done [#allocation4], 16
    $region57: #{tpu_custom_call.1} parent=1 // pred_fallthru
      _
    // Predicated region
    $region58: #{tpu_custom_call.1} parent=1 // pred_check
      _
    $region59: #{tpu_custom_call.1} parent=1 // pred_check_branch
      %1222 = sbr.rel (0) target = $region61
    $region60: #{tpu_custom_call.1} parent=1 // pred_region
      %1223 = dma.done [#allocation12], 16
    $region61: #{tpu_custom_call.1} parent=1 // pred_fallthru
      _
    %1224 = vsyncpa [#allocation3], 1
    %1225 = vsyncpa [#allocation6], 1
    %1226 = vsyncpa [#allocation9], 1
    %1227 = vsyncpa [#allocation4], 1
    %1228 = vsyncpa [#allocation12], 1

</llo_original>
